<compile_context>
chip_gen: v7x
topology: tpu7x:2x2x1
jax: 0.10.0
libtpu: 0.0.40
codegen_flags: <defaults>
</compile_context>

<pallas_src>
import functools

import jax
import jax.numpy as jnp
from jax.experimental import pallas as pl
from jax.experimental.pallas import tpu as pltpu


# ---------------------------------------------------------------------------
# Per-generation VMEM budgets (tile-sizing budget, hard vmem_limit cap)
# ---------------------------------------------------------------------------

def _gen_vmem_budgets():
    kind = ""
    try:
        kind = jax.devices()[0].device_kind.lower()
    except Exception:
        pass
    if "v5" in kind:            # v5e/v5p: keep tiles near the 16 MiB scoped default
        return 12 << 20, 100 << 20
    if "v6" in kind:            # v6e: 128 MiB physical VMEM -> raise the scoped cap
        return 80 << 20, 110 << 20
    if "7" in kind:             # v7x: 64 MiB physical per TensorCore
        return 36 << 20, 56 << 20
    return 24 << 20, 56 << 20


# ---------------------------------------------------------------------------
# Scalar pair reductions (MSE / KL): gridded accumulators over a free 2D view
# of the native arrays (no reshape(-1)+pad HBM copy).
# ---------------------------------------------------------------------------

def _sq_diff_sum_kernel(a_ref, b_ref, o_ref):
    @pl.when(pl.program_id(0) == 0)
    def _init():
        o_ref[...] = jnp.zeros_like(o_ref)
    d = a_ref[...].astype(jnp.float32) - b_ref[...].astype(jnp.float32)
    o_ref[...] += jnp.sum(d * d)


def _kl_sum_kernel(m_ref, lv_ref, o_ref):
    @pl.when(pl.program_id(0) == 0)
    def _init():
        o_ref[...] = jnp.zeros_like(o_ref)
    m = m_ref[...].astype(jnp.float32)
    lv = lv_ref[...].astype(jnp.float32)
    # sum(1 + log_var - mean^2 - exp(log_var))
    o_ref[...] += jnp.sum(1.0 + lv - m * m - jnp.exp(lv))


def _pick_rows(total, row_bytes, budget):
    """Largest row tile obtained by halving (stays a divisor, multiple of 8)."""
    t = total
    while t % 2 == 0 and (t // 2) % 8 == 0 and 4 * t * row_bytes > budget:
        t //= 2
    return t


def _pair_reduce(kernel, a, b, tile_budget, hard_cap):
    """Gridded scalar reduction over two same-shape arrays (native layout)."""
    a2 = a.reshape(-1, a.shape[-1])          # contiguous collapse: free in XLA
    b2 = b.reshape(-1, b.shape[-1])
    rows, cols = a2.shape
    t = _pick_rows(rows, cols * a2.dtype.itemsize, tile_budget)
    vmem = int(min(hard_cap, max(32 << 20, 8 * t * cols * a2.dtype.itemsize)))
    out = pl.pallas_call(
        kernel,
        out_shape=jax.ShapeDtypeStruct((1, 1), jnp.float32),
        grid_spec=pltpu.PrefetchScalarGridSpec(
            num_scalar_prefetch=0,
            grid=(rows // t,),
            in_specs=[pl.BlockSpec((t, cols), lambda i: (i, 0)),
                      pl.BlockSpec((t, cols), lambda i: (i, 0))],
            out_specs=pl.BlockSpec((1, 1), lambda i: (0, 0))),
        compiler_params=pltpu.CompilerParams(
            dimension_semantics=("arbitrary",),
            vmem_limit_bytes=vmem),
    )(a2, b2)
    return out[0, 0]


# ---------------------------------------------------------------------------
# Conv tiling heuristics
# ---------------------------------------------------------------------------

def _pick_row_tile(H, W, Cin, Cout, budget):
    """Rows of output per grid step; largest power-of-two divisor of H that fits."""
    def footprint(th):
        inp = 2 * 2 * (th + 2) * W * Cin * 2           # 2 streams x 2 buffers, bf16
        outp = 2 * 2 * th * W * Cout * 2
        wgt = 2 * 9 * Cin * Cout * 2 + 2 * Cout * 4    # weights double-buffered + bias
        pad = (th + 2) * (W + 2) * Cin * 2             # padded-slab scratch
        acc = 3 * th * W * Cout * 4                    # two live f32 accs + matmul temp
        win = 2 * th * W * Cin * 2                     # tap window temporaries
        return inp + outp + wgt + pad + acc + win

    th = H
    while th > 32 and th % 2 == 0:                     # review: 8-32 rows per step
        th //= 2
    while th > 1 and th % 2 == 0 and footprint(th) > budget:
        th //= 2
    return th, footprint(th)


# ---------------------------------------------------------------------------
# General 3x3 conv + bias + ReLU on two NHWC streams sharing weights,
# optional fused perceptual-L1 partial sum.
# ---------------------------------------------------------------------------

def conv3x3_relu_pair(x, y, w, b, *, do_l1):
    """x, y: (B,H,W,Cin); w: (3,3,Cin,Cout); b: (Cout,).  Returns (ox, oy, l1_sum|None)."""
    B, H, W, Cin = x.shape
    Cout = w.shape[-1]
    tile_budget, hard_cap = _gen_vmem_budgets()
    TH, fp = _pick_row_tile(H, W, Cin, Cout, tile_budget)
    R = H // TH

    xb = x.astype(jnp.bfloat16)
    yb = y.astype(jnp.bfloat16)
    wb = w.astype(jnp.bfloat16)
    b2 = b.reshape(1, Cout).astype(jnp.float32)

    def kernel(xt_ref, xm_ref, xd_ref, yt_ref, ym_ref, yd_ref, w_ref, bias_ref, *rest):
        if do_l1:
            ox_ref, oy_ref, l1_ref, pad_ref = rest
        else:
            ox_ref, oy_ref, pad_ref = rest
        r = pl.program_id(1)
        last_r = pl.num_programs(1) - 1

        if do_l1:
            @pl.when(r == 0)
            def _init():
                l1_ref[...] = jnp.zeros_like(l1_ref)

        # Zero the padded slab once per step (keeps the W-border and image-boundary
        # rows at exactly 0; megacore-safe because it runs every step).
        pad_ref[...] = jnp.zeros_like(pad_ref)
        keep_top = jnp.where(r > 0, 1.0, 0.0).astype(jnp.bfloat16)
        keep_bot = jnp.where(r < last_r, 1.0, 0.0).astype(jnp.bfloat16)

        stream_outs = []
        for (t_ref, m_ref, d_ref, o_ref) in ((xt_ref, xm_ref, xd_ref, ox_ref),
                                             (yt_ref, ym_ref, yd_ref, oy_ref)):
            # Assemble the zero-padded (TH+2, W+2, Cin) input slab in VMEM.
            pad_ref[0, 1:W + 1, :] = t_ref[0, 0] * keep_top
            pad_ref[1:TH + 1, 1:W + 1, :] = m_ref[0]
            pad_ref[TH + 1, 1:W + 1, :] = d_ref[0, 0] * keep_bot

            # 9 taps; each tap is one MXU matmul with M = TH*W rows.
            acc = jnp.zeros((TH * W, Cout), jnp.float32)
            for kh in range(3):
                for kw in range(3):
                    win = pad_ref[kh:kh + TH, kw:kw + W, :]
                    acc = acc + jnp.dot(win.reshape(TH * W, Cin), w_ref[kh, kw],
                                        preferred_element_type=jnp.float32)

            o = jnp.maximum(acc + bias_ref[...], 0.0)
            # TODO(synk): lane-dense (128-wide) store for Cout=64 layers.
            o_ref[0, 0] = o.astype(o_ref.dtype)
            if do_l1:
                stream_outs.append(o)

        if do_l1:
            # Fused perceptual-L1 partial sum (f32, pre-cast): avoids a full HBM
            # re-read of both feature tensors by a separate reduction kernel.
            l1_ref[...] += jnp.sum(jnp.abs(stream_outs[0] - stream_outs[1]))

    halo_top = pl.BlockSpec(
        (1, 1, W, Cin), lambda bb, rr: (bb, jnp.maximum(rr * TH - 1, 0), 0, 0))
    mid_spec = pl.BlockSpec((1, TH, W, Cin), lambda bb, rr: (bb, rr, 0, 0))
    halo_bot = pl.BlockSpec(
        (1, 1, W, Cin), lambda bb, rr: (bb, jnp.minimum(rr * TH + TH, H - 1), 0, 0))
    w_spec = pl.BlockSpec((3, 3, Cin, Cout), lambda bb, rr: (0, 0, 0, 0))
    b_spec = pl.BlockSpec((1, Cout), lambda bb, rr: (0, 0))
    feat_spec = pl.BlockSpec((1, 1, TH * W, Cout), lambda bb, rr: (bb, rr, 0, 0))

    out_shape = [jax.ShapeDtypeStruct((B, R, TH * W, Cout), jnp.bfloat16),
                 jax.ShapeDtypeStruct((B, R, TH * W, Cout), jnp.bfloat16)]
    out_specs = [feat_spec, feat_spec]
    dims = ("parallel", "parallel")
    if do_l1:
        out_shape.append(jax.ShapeDtypeStruct((B, 1), jnp.float32))
        out_specs.append(pl.BlockSpec((1, 1), lambda bb, rr: (bb, 0)))
        dims = ("parallel", "arbitrary")   # row axis revisits the per-batch L1 block

    vmem_limit = int(min(hard_cap, max(16 << 20, 2 * fp)))
    flops = 2 * 2 * B * H * W * 9 * Cin * Cout
    bytes_accessed = (2 * B * (H + 2 * R) * W * Cin * 2
                      + 9 * Cin * Cout * 2 + Cout * 4
                      + 2 * B * H * W * Cout * 2)

    outs = pl.pallas_call(
        kernel,
        out_shape=tuple(out_shape),
        grid_spec=pltpu.PrefetchScalarGridSpec(
            num_scalar_prefetch=0,
            grid=(B, R),
            in_specs=[halo_top, mid_spec, halo_bot,
                      halo_top, mid_spec, halo_bot,
                      w_spec, b_spec],
            out_specs=tuple(out_specs),
            scratch_shapes=[pltpu.VMEM((TH + 2, W + 2, Cin), jnp.bfloat16)]),
        compiler_params=pltpu.CompilerParams(
            dimension_semantics=dims,
            vmem_limit_bytes=vmem_limit),
        cost_estimate=pl.CostEstimate(flops=flops, transcendentals=0,
                                      bytes_accessed=bytes_accessed),
    )(xb, xb, xb, yb, yb, yb, wb, b2)

    ox = outs[0].reshape(B, H, W, Cout)     # contiguous -> free metadata reshape
    oy = outs[1].reshape(B, H, W, Cout)
    l1 = jnp.sum(outs[2]) if do_l1 else None
    return ox, oy, l1


# ---------------------------------------------------------------------------
# Stem conv (Cin=3): XLA-side 3x3 patch packing (K=27) + a single dense matmul
# kernel per tile (avoids a K=3 MXU matmul and narrow-lane in-kernel reshapes).
# ---------------------------------------------------------------------------

def _im2col3x3(x_nhwc):
    B, H, W, C = x_nhwc.shape
    xp = jnp.pad(x_nhwc, ((0, 0), (1, 1), (1, 1), (0, 0)))
    cols = [xp[:, kh:kh + H, kw:kw + W, :] for kh in range(3) for kw in range(3)]
    return jnp.concatenate(cols, axis=-1)            # (B, H, W, 9*C)


def stem_conv3x3_relu_pair(x, y, w, b):
    B, H, W, Cin = x.shape
    Cout = w.shape[-1]
    K = 9 * Cin
    tile_budget, hard_cap = _gen_vmem_budgets()
    TH, fp = _pick_row_tile(H, W, K, Cout, tile_budget)
    R = H // TH

    px = _im2col3x3(x.astype(jnp.bfloat16)).reshape(B, R, TH * W, K)
    py = _im2col3x3(y.astype(jnp.bfloat16)).reshape(B, R, TH * W, K)
    wb = w.reshape(K, Cout).astype(jnp.bfloat16)      # (kh, kw, c) order matches im2col
    b2 = b.reshape(1, Cout).astype(jnp.float32)

    def kernel(px_ref, py_ref, w_ref, bias_ref, ox_ref, oy_ref):
        for p_ref, o_ref in ((px_ref, ox_ref), (py_ref, oy_ref)):
            acc = jnp.dot(p_ref[0, 0], w_ref[...], preferred_element_type=jnp.float32)
            o = jnp.maximum(acc + bias_ref[...], 0.0)
            o_ref[0, 0] = o.astype(o_ref.dtype)

    p_spec = pl.BlockSpec((1, 1, TH * W, K), lambda bb, rr: (bb, rr, 0, 0))
    o_spec = pl.BlockSpec((1, 1, TH * W, Cout), lambda bb, rr: (bb, rr, 0, 0))

    outs = pl.pallas_call(
        kernel,
        out_shape=(jax.ShapeDtypeStruct((B, R, TH * W, Cout), jnp.bfloat16),
                   jax.ShapeDtypeStruct((B, R, TH * W, Cout), jnp.bfloat16)),
        grid_spec=pltpu.PrefetchScalarGridSpec(
            num_scalar_prefetch=0,
            grid=(B, R),
            in_specs=[p_spec, p_spec,
                      pl.BlockSpec((K, Cout), lambda bb, rr: (0, 0)),
                      pl.BlockSpec((1, Cout), lambda bb, rr: (0, 0))],
            out_specs=(o_spec, o_spec)),
        compiler_params=pltpu.CompilerParams(
            dimension_semantics=("parallel", "parallel"),
            vmem_limit_bytes=int(min(hard_cap, max(16 << 20, 2 * fp)))),
        cost_estimate=pl.CostEstimate(
            flops=2 * 2 * B * H * W * K * Cout, transcendentals=0,
            bytes_accessed=2 * B * H * W * (K + Cout) * 2 + K * Cout * 2),
    )(px, py, wb, b2)
    return outs[0].reshape(B, H, W, Cout), outs[1].reshape(B, H, W, Cout)


def maxpool2x2(x_nhwc):
    B, H, W, C = x_nhwc.shape
    # TODO(synk): fuse the 2x2 pool into the preceding conv epilogue to save one
    # full-resolution activation write+read through HBM per VGG block.
    return x_nhwc.reshape(B, H // 2, 2, W // 2, 2, C).max(axis=(2, 4))


# ---------------------------------------------------------------------------
# VGG16 feature blocks (synthetic, deterministic weights)
# ---------------------------------------------------------------------------

VGG_CFG = [
    [(3, 64), (64, 64)],                    # features[:4]
    [(64, 128), (128, 128)],                # features[4:9]   (maxpool first)
    [(128, 256), (256, 256), (256, 256)],   # features[9:16]  (maxpool first)
    [(256, 512), (512, 512), (512, 512)],   # features[16:23] (maxpool first)
]


def init_vgg_params(key):
    params = []
    for blk in VGG_CFG:
        layers = []
        for cin, cout in blk:
            key, kw_, kb_ = jax.random.split(key, 3)
            scale = (2.0 / (9.0 * cin)) ** 0.5
            wgt = jax.random.normal(kw_, (3, 3, cin, cout), jnp.float32) * scale
            bias = jax.random.normal(kb_, (cout,), jnp.float32) * 0.01
            layers.append((wgt, bias))
        params.append(layers)
    return params


IMAGENET_MEAN = jnp.array([0.485, 0.456, 0.406], jnp.float32)
IMAGENET_STD = jnp.array([0.229, 0.224, 0.225], jnp.float32)


def vgg_perceptual_loss(x_nchw, y_nchw, params,
                        feature_layers=(0, 1, 2, 3), style_layers=()):
    if x_nchw.shape[1] != 3:
        x_nchw = jnp.tile(x_nchw, (1, 3, 1, 1))
        y_nchw = jnp.tile(y_nchw, (1, 3, 1, 1))
    # NCHW -> NHWC + ImageNet normalization; resize=False in VAEComposedLoss.
    xs = jnp.transpose(x_nchw, (0, 2, 3, 1)).astype(jnp.float32)
    ys = jnp.transpose(y_nchw, (0, 2, 3, 1)).astype(jnp.float32)
    xs = ((xs - IMAGENET_MEAN) / IMAGENET_STD).astype(jnp.bfloat16)
    ys = ((ys - IMAGENET_MEAN) / IMAGENET_STD).astype(jnp.bfloat16)

    loss = jnp.float32(0.0)
    for i, block in enumerate(params):
        if i > 0:
            xs = maxpool2x2(xs)
            ys = maxpool2x2(ys)
        n = len(block)
        for j, (wgt, bias) in enumerate(block):
            fuse_l1 = (j == n - 1) and (i in feature_layers)
            if i == 0 and j == 0:
                xs, ys = stem_conv3x3_relu_pair(xs, ys, wgt, bias)
            else:
                xs, ys, l1_sum = conv3x3_relu_pair(xs, ys, wgt, bias, do_l1=fuse_l1)
                if fuse_l1:
                    loss = loss + l1_sum / xs.size    # F.l1_loss reduction='mean'
        # TODO(synk): style_layers (Gram-matrix L1) branch not implemented (default []).
    return loss


# ---------------------------------------------------------------------------
# VAE composed loss
# ---------------------------------------------------------------------------

def vae_loss_terms(x, x_rec, z_mean, z_log_var):
    numel = x.size
    tile_budget, hard_cap = _gen_vmem_budgets()
    # Both terms normalized by x.numel(), matching the PyTorch reference vae_loss.
    recon = _pair_reduce(_sq_diff_sum_kernel, x, x_rec, tile_budget, hard_cap) / numel
    kl = -0.5 * _pair_reduce(_kl_sum_kernel, z_mean, z_log_var,
                             tile_budget, hard_cap) / numel
    return recon, kl


def vae_composed_loss(x, x_rec, z_mean, z_log_var, vgg_params,
                      kl_beta=1.5, vgg_weight=0.0,
                      feature_layers=(0, 1, 2, 3), style_layers=(),
                      compute_vgg=None):
    recon_mse, latent = vae_loss_terms(x, x_rec, z_mean, z_log_var)
    # Trace-time gate: with the default vgg_weight=0.0 the whole VGG branch is dead
    # work multiplied by zero.  vgg_weight must be a Python float (or pass compute_vgg
    # explicitly) so this stays a static decision under jit.
    if compute_vgg is None:
        compute_vgg = (vgg_weight != 0.0)
    if compute_vgg:
        vgg = vgg_perceptual_loss(x, x_rec, vgg_params, feature_layers, style_layers)
    else:
        vgg = jnp.float32(0.0)
    recon = recon_mse + vgg_weight * vgg
    loss = recon + kl_beta * latent
    return loss, vgg, recon_mse, latent


# ---------------------------------------------------------------------------

if __name__ == "__main__":
    key = jax.random.PRNGKey(0)
    k1, k2, k3, k4, kp = jax.random.split(key, 5)

    B, C, H, W = 2, 3, 16, 16
    Z = 8
    x = jax.random.uniform(k1, (B, C, H, W), jnp.float32)
    x_rec = jax.random.uniform(k2, (B, C, H, W), jnp.float32)
    z_mean = jax.random.normal(k3, (B, Z), jnp.float32) * 0.1
    z_log_var = jax.random.normal(k4, (B, Z), jnp.float32) * 0.1
    vgg_params = init_vgg_params(kp)

    # Default shipped config: vgg_weight=0.0 -> VGG branch skipped at trace time.
    fast = jax.jit(functools.partial(vae_composed_loss, kl_beta=1.5, vgg_weight=0.0))
    out_fast = fast(x, x_rec, z_mean, z_log_var, vgg_params)
    jax.block_until_ready(out_fast)

    # Full VGG perceptual path (stem matmul, blocked convs, fused L1 reductions).
    full = jax.jit(functools.partial(vae_composed_loss, kl_beta=1.5, vgg_weight=0.1))
    out_full = full(x, x_rec, z_mean, z_log_var, vgg_params)
    jax.block_until_ready(out_full)

    print("KERNEL_OK")
</pallas_src>

<mosaic_0001>
module attributes {stable_mosaic.version = 11 : i64} {
  func.func @_kl_sum_kernel(%arg0: i32, %arg1: memref<2x8xf32, #tpu.memory_space<vmem>>, %arg2: memref<2x8xf32, #tpu.memory_space<vmem>>, %arg3: memref<1x1xf32, #tpu.memory_space<vmem>>) attributes {dimension_semantics = [#tpu.dimension_semantics<arbitrary>], iteration_bounds = array<i64: 1>, scalar_prefetch = 0 : i64, scratch_operands = 0 : i64, tpu.core_type = #tpu.core_type<tc>, window_params = [{transform_indices = @transform_0, window_bounds = array<i64: 2, 8>}, {transform_indices = @transform_1, window_bounds = array<i64: 2, 8>}, {pipeline_mode = #tpu.pipeline_mode<synchronous>, transform_indices = @transform_2, window_bounds = array<i64: 1, 1>}]} {
    %c0_i32 = arith.constant 0 : i32
    %0 = arith.cmpi eq, %arg0, %c0_i32 : i32
    %1 = arith.extui %0 : i1 to i32
    %c0_i32_0 = arith.constant 0 : i32
    %2 = arith.cmpi ne, %1, %c0_i32_0 : i32
    scf.if %2 {
      %cst_9 = arith.constant 0.000000e+00 : f32
      %19 = vector.broadcast %cst_9 : f32 to vector<1x1xf32>
      %c0_10 = arith.constant 0 : index
      %c0_11 = arith.constant 0 : index
      %20 = vector.load %arg3[%c0_10, %c0_11] : memref<1x1xf32, #tpu.memory_space<vmem>>, vector<1x1xf32>
      tpu.vector_store %arg3[%c0_10, %c0_11], %19 {strides = array<i32>} : memref<1x1xf32, #tpu.memory_space<vmem>>, vector<1x1xf32>,
    } else {
    }
    %c0 = arith.constant 0 : index
    %c0_1 = arith.constant 0 : index
    %3 = vector.load %arg1[%c0, %c0_1] : memref<2x8xf32, #tpu.memory_space<vmem>>, vector<2x8xf32>
    %c0_2 = arith.constant 0 : index
    %c0_3 = arith.constant 0 : index
    %4 = vector.load %arg2[%c0_2, %c0_3] : memref<2x8xf32, #tpu.memory_space<vmem>>, vector<2x8xf32>
    %c0_4 = arith.constant 0 : index
    %c0_5 = arith.constant 0 : index
    %5 = vector.load %arg3[%c0_4, %c0_5] : memref<1x1xf32, #tpu.memory_space<vmem>>, vector<1x1xf32>
    %cst = arith.constant 1.000000e+00 : f32
    %6 = vector.broadcast %cst : f32 to vector<2x8xf32>
    %7 = arith.addf %6, %4 : vector<2x8xf32>
    %8 = arith.mulf %3, %3 : vector<2x8xf32>
    %9 = arith.subf %7, %8 : vector<2x8xf32>
    %10 = math.exp %4 : vector<2x8xf32>
    %11 = arith.subf %9, %10 : vector<2x8xf32>
    %12 = vector.shape_cast %11 : vector<2x8xf32> to vector<1x2x8xf32>
    %cst_6 = arith.constant dense<0.000000e+00> : vector<1xf32>
    %13 = vector.multi_reduction <add>, %12, %cst_6 [1, 2] : vector<1x2x8xf32> to vector<1xf32>
    %14 = vector.shape_cast %13 : vector<1xf32> to vector<1x1x1xf32>
    %15 = vector.extract %14[0, 0, 0] : f32 from vector<1x1x1xf32>
    %16 = vector.broadcast %15 : f32 to vector<1x1xf32>
    %17 = arith.addf %5, %16 : vector<1x1xf32>
    %c0_7 = arith.constant 0 : index
    %c0_8 = arith.constant 0 : index
    %18 = vector.load %arg3[%c0_7, %c0_8] : memref<1x1xf32, #tpu.memory_space<vmem>>, vector<1x1xf32>
    tpu.vector_store %arg3[%c0_7, %c0_8], %17 {strides = array<i32>} : memref<1x1xf32, #tpu.memory_space<vmem>>, vector<1x1xf32>,
    return
  }
  func.func @transform_0(%arg0: i32) -> (i32, i32) {
    %c0_i32 = arith.constant 0 : i32
    %c0_i32_0 = arith.constant 0 : i32
    return %arg0, %c0_i32 : i32, i32
  }
  func.func @transform_1(%arg0: i32) -> (i32, i32) {
    %c0_i32 = arith.constant 0 : i32
    %c0_i32_0 = arith.constant 0 : i32
    return %arg0, %c0_i32 : i32, i32
  }
  func.func @transform_2(%arg0: i32) -> (i32, i32) {
    %c0_i32 = arith.constant 0 : i32
    %c0_i32_0 = arith.constant 0 : i32
    %c0_i32_1 = arith.constant 0 : i32
    return %c0_i32, %c0_i32_0 : i32, i32
  }
}

module attributes {stable_mosaic.version = 11 : i64} {
  func.func @_sq_diff_sum_kernel(%arg0: i32, %arg1: memref<96x16xf32, #tpu.memory_space<vmem>>, %arg2: memref<96x16xf32, #tpu.memory_space<vmem>>, %arg3: memref<1x1xf32, #tpu.memory_space<vmem>>) attributes {dimension_semantics = [#tpu.dimension_semantics<arbitrary>], iteration_bounds = array<i64: 1>, scalar_prefetch = 0 : i64, scratch_operands = 0 : i64, tpu.core_type = #tpu.core_type<tc>, window_params = [{transform_indices = @transform_0, window_bounds = array<i64: 96, 16>}, {transform_indices = @transform_1, window_bounds = array<i64: 96, 16>}, {pipeline_mode = #tpu.pipeline_mode<synchronous>, transform_indices = @transform_2, window_bounds = array<i64: 1, 1>}]} {
    %c0_i32 = arith.constant 0 : i32
    %0 = arith.cmpi eq, %arg0, %c0_i32 : i32
    %1 = arith.extui %0 : i1 to i32
    %c0_i32_0 = arith.constant 0 : i32
    %2 = arith.cmpi ne, %1, %c0_i32_0 : i32
    scf.if %2 {
      %cst_8 = arith.constant 0.000000e+00 : f32
      %15 = vector.broadcast %cst_8 : f32 to vector<1x1xf32>
      %c0_9 = arith.constant 0 : index
      %c0_10 = arith.constant 0 : index
      %16 = vector.load %arg3[%c0_9, %c0_10] : memref<1x1xf32, #tpu.memory_space<vmem>>, vector<1x1xf32>
      tpu.vector_store %arg3[%c0_9, %c0_10], %15 {strides = array<i32>} : memref<1x1xf32, #tpu.memory_space<vmem>>, vector<1x1xf32>,
    } else {
    }
    %c0 = arith.constant 0 : index
    %c0_1 = arith.constant 0 : index
    %3 = vector.load %arg1[%c0, %c0_1] : memref<96x16xf32, #tpu.memory_space<vmem>>, vector<96x16xf32>
    %c0_2 = arith.constant 0 : index
    %c0_3 = arith.constant 0 : index
    %4 = vector.load %arg2[%c0_2, %c0_3] : memref<96x16xf32, #tpu.memory_space<vmem>>, vector<96x16xf32>
    %5 = arith.subf %3, %4 : vector<96x16xf32>
    %c0_4 = arith.constant 0 : index
    %c0_5 = arith.constant 0 : index
    %6 = vector.load %arg3[%c0_4, %c0_5] : memref<1x1xf32, #tpu.memory_space<vmem>>, vector<1x1xf32>
    %7 = arith.mulf %5, %5 : vector<96x16xf32>
    %8 = vector.shape_cast %7 : vector<96x16xf32> to vector<1x96x16xf32>
    %cst = arith.constant dense<0.000000e+00> : vector<1xf32>
    %9 = vector.multi_reduction <add>, %8, %cst [1, 2] : vector<1x96x16xf32> to vector<1xf32>
    %10 = vector.shape_cast %9 : vector<1xf32> to vector<1x1x1xf32>
    %11 = vector.extract %10[0, 0, 0] : f32 from vector<1x1x1xf32>
    %12 = vector.broadcast %11 : f32 to vector<1x1xf32>
    %13 = arith.addf %6, %12 : vector<1x1xf32>
    %c0_6 = arith.constant 0 : index
    %c0_7 = arith.constant 0 : index
    %14 = vector.load %arg3[%c0_6, %c0_7] : memref<1x1xf32, #tpu.memory_space<vmem>>, vector<1x1xf32>
    tpu.vector_store %arg3[%c0_6, %c0_7], %13 {strides = array<i32>} : memref<1x1xf32, #tpu.memory_space<vmem>>, vector<1x1xf32>,
    return
  }
  func.func @transform_0(%arg0: i32) -> (i32, i32) {
    %c0_i32 = arith.constant 0 : i32
    %c0_i32_0 = arith.constant 0 : i32
    return %arg0, %c0_i32 : i32, i32
  }
  func.func @transform_1(%arg0: i32) -> (i32, i32) {
    %c0_i32 = arith.constant 0 : i32
    %c0_i32_0 = arith.constant 0 : i32
    return %arg0, %c0_i32 : i32, i32
  }
  func.func @transform_2(%arg0: i32) -> (i32, i32) {
    %c0_i32 = arith.constant 0 : i32
    %c0_i32_0 = arith.constant 0 : i32
    %c0_i32_1 = arith.constant 0 : i32
    return %c0_i32, %c0_i32_0 : i32, i32
  }
}

</mosaic_0001>

<llo_original>
// kernel: vae_composed_loss.2
$region0: #{vae_composed_loss.2}
  #allocation0 [shape = 'u32[]', space=smem, size = 0x4, offset = 0x4, fixed_abs, tag = 'smem constant byte address 0x4 - core index']
  #allocation1 [shape = 'u32[144,128]{1,0:T(1,128)}', space=vmem, size = 0x12000, scoped, tag = 'internal scratch']
  %s0 = inlined_call_operand.hbm [shape: f32[96,16], index: 0, kind: input, shape index: {}]
  %s1 = inlined_call_operand.hbm [shape: f32[96,16], index: 1, kind: input, shape index: {}]
  %s2 = inlined_call_operand.hbm [shape: f32[1,1], index: 2, kind: output, shape index: {}]
  %s3 = sld [smem:[#allocation0]]
  $region30: #{vae_composed_loss.2} parent=0
    _
  %s5 = ssub.s32 1, %s3
  %s6 = scalar_select 0, %s5, %s3
  $region1: #{vae_composed_loss.2} parent=0
    #allocation2 [shape = 'u8[49152]{0}', space=vmem, size = 0xc000, scoped, tag = 'input window, operand 0, single buffered']
    #allocation3 [shape = 's32[1]{0}', space=sflag, size = 0x4, scoped, tag = 'scoped memory for vae_composed_loss.2']
    #allocation4 [shape = 's32[1]{0}', space=sflag, size = 0x4, scoped, tag = 'scoped memory for vae_composed_loss.2']
    #allocation5 [shape = 'u8[49152]{0}', space=vmem, size = 0xc000, scoped, tag = 'input window, operand 1, single buffered']
    #allocation6 [shape = 's32[1]{0}', space=sflag, size = 0x4, scoped, tag = 'scoped memory for vae_composed_loss.2']
    #allocation7 [shape = 'u8[512]{0}', space=vmem, size = 0x400, scoped, tag = 'output window, operand 0, single buffered']
    %7 = vsyncpa [#allocation3], 0
    %8 = vsyncpa [#allocation6], 0
    %9 = vsyncpa [#allocation4], 0
    // Predicated region
    $region2: #{vae_composed_loss.2} parent=1 // pred_check
      _
    $region3: #{vae_composed_loss.2} parent=1 // pred_check_branch
      %11 = sbr.rel (0) target = $region5
    $region4: #{vae_composed_loss.2} parent=1 // pred_region
      %s13 = ssub.s32 1536, 1536
      %14 = vsyncadd [#allocation3], %s13
      %s15 = sshll.u32 [#allocation2], 4
      %s16 = int_to_ptr.vmem [resolvable:$true] %s15
      %21 = dma.hbm_to_vmem [thread:$0]  %s0, 1536, %s16, [#allocation3], 128, 128, 8
    $region5: #{vae_composed_loss.2} parent=1 // pred_fallthru
      _
    // Predicated region
    $region6: #{vae_composed_loss.2} parent=1 // pred_check
      _
    $region7: #{vae_composed_loss.2} parent=1 // pred_check_branch
      %23 = sbr.rel (0) target = $region9
    $region8: #{vae_composed_loss.2} parent=1 // pred_region
      %s25 = ssub.s32 1536, 1536
      %26 = vsyncadd [#allocation6], %s25
      %s27 = sshll.u32 [#allocation5], 4
      %s28 = int_to_ptr.vmem [resolvable:$true] %s27
      %33 = dma.hbm_to_vmem [thread:$0]  %s1, 1536, %s28, [#allocation6], 128, 128, 8
    $region9: #{vae_composed_loss.2} parent=1 // pred_fallthru
      _
    // Predicated region
    $region10: #{vae_composed_loss.2} parent=1 // pred_check
      _
    $region11: #{vae_composed_loss.2} parent=1 // pred_check_branch
      %35 = sbr.rel (0) target = $region13
    $region12: #{vae_composed_loss.2} parent=1 // pred_region
      %36 = dma.done [#allocation3], 1536
    $region13: #{vae_composed_loss.2} parent=1 // pred_fallthru
      _
    // Predicated region
    $region14: #{vae_composed_loss.2} parent=1 // pred_check
      _
    $region15: #{vae_composed_loss.2} parent=1 // pred_check_branch
      %38 = sbr.rel (0) target = $region17
    $region16: #{vae_composed_loss.2} parent=1 // pred_region
      %39 = dma.done [#allocation6], 1536
    $region17: #{vae_composed_loss.2} parent=1 // pred_fallthru
      _
    %p40 = scmp.eq.s32.totalorder 0, 0
    // Predicated region
    $region18: #{vae_composed_loss.2} parent=1 // pred_check
      %p41 = pneg %p40
    $region19: #{vae_composed_loss.2} parent=1 // pred_check_branch
      %43 = sbr.rel (%p41) target = $region21
    $region20: #{vae_composed_loss.2} parent=1 // pred_region
      %vm44 = vcmask 0
      %45 = vst.msk [vmem:[#allocation7] sm:$0x1] %vm44, 0.0
    $region21: #{vae_composed_loss.2} parent=1 // pred_fallthru
      _
    %v46 = vld [vmem:[#allocation2] sm:$0xff]
    %v47 = vld [vmem:[#allocation2 + $0x8] sm:$0xff]
    %v48 = vld [vmem:[#allocation2 + $0x10] sm:$0xff]
    %v49 = vld [vmem:[#allocation2 + $0x18] sm:$0xff]
    %v50 = vld [vmem:[#allocation2 + $0x20] sm:$0xff]
    %v51 = vld [vmem:[#allocation2 + $0x28] sm:$0xff]
    %v52 = vld [vmem:[#allocation2 + $0x30] sm:$0xff]
    %v53 = vld [vmem:[#allocation2 + $0x38] sm:$0xff]
    %v54 = vld [vmem:[#allocation2 + $0x40] sm:$0xff]
    %v55 = vld [vmem:[#allocation2 + $0x48] sm:$0xff]
    %v56 = vld [vmem:[#allocation2 + $0x50] sm:$0xff]
    %v57 = vld [vmem:[#allocation2 + $0x58] sm:$0xff]
    %v58 = vld [vmem:[#allocation5] sm:$0xff]
    %v59 = vld [vmem:[#allocation5 + $0x8] sm:$0xff]
    %v60 = vld [vmem:[#allocation5 + $0x10] sm:$0xff]
    %v61 = vld [vmem:[#allocation5 + $0x18] sm:$0xff]
    %v62 = vld [vmem:[#allocation5 + $0x20] sm:$0xff]
    %v63 = vld [vmem:[#allocation5 + $0x28] sm:$0xff]
    %v64 = vld [vmem:[#allocation5 + $0x30] sm:$0xff]
    %v65 = vld [vmem:[#allocation5 + $0x38] sm:$0xff]
    %v66 = vld [vmem:[#allocation5 + $0x40] sm:$0xff]
    %v67 = vld [vmem:[#allocation5 + $0x48] sm:$0xff]
    %v68 = vld [vmem:[#allocation5 + $0x50] sm:$0xff]
    %v69 = vld [vmem:[#allocation5 + $0x58] sm:$0xff]
    %v70 = vsub.f32 %v46, %v58
    %v71 = vsub.f32 %v47, %v59
    %v72 = vsub.f32 %v48, %v60
    %v73 = vsub.f32 %v49, %v61
    %v74 = vsub.f32 %v50, %v62
    %v75 = vsub.f32 %v51, %v63
    %v76 = vsub.f32 %v52, %v64
    %v77 = vsub.f32 %v53, %v65
    %v78 = vsub.f32 %v54, %v66
    %v79 = vsub.f32 %v55, %v67
    %v80 = vsub.f32 %v56, %v68
    %v81 = vsub.f32 %v57, %v69
    %v82 = vld [vmem:[#allocation7] sm:$0x1]
    %v83 = vmul.f32 %v70, %v70
    %v84 = vmul.f32 %v71, %v71
    %v85 = vmul.f32 %v72, %v72
    %v86 = vmul.f32 %v73, %v73
    %v87 = vmul.f32 %v74, %v74
    %v88 = vmul.f32 %v75, %v75
    %v89 = vmul.f32 %v76, %v76
    %v90 = vmul.f32 %v77, %v77
    %v91 = vmul.f32 %v78, %v78
    %v92 = vmul.f32 %v79, %v79
    %v93 = vmul.f32 %v80, %v80
    %v94 = vmul.f32 %v81, %v81
    %vm95 = vcmask 130048
    %v96 = vsel %vm95, %v83, 0.0
    %v97 = vsel %vm95, %v84, 0.0
    %v98 = vadd.f32 %v96, %v97
    %v99 = vsel %vm95, %v85, 0.0
    %v100 = vadd.f32 %v98, %v99
    %v101 = vsel %vm95, %v86, 0.0
    %v102 = vadd.f32 %v100, %v101
    %v103 = vsel %vm95, %v87, 0.0
    %v104 = vadd.f32 %v102, %v103
    %v105 = vsel %vm95, %v88, 0.0
    %v106 = vadd.f32 %v104, %v105
    %v107 = vsel %vm95, %v89, 0.0
    %v108 = vadd.f32 %v106, %v107
    %v109 = vsel %vm95, %v90, 0.0
    %v110 = vadd.f32 %v108, %v109
    %v111 = vsel %vm95, %v91, 0.0
    %v112 = vadd.f32 %v110, %v111
    %v113 = vsel %vm95, %v92, 0.0
    %v114 = vadd.f32 %v112, %v113
    %v115 = vsel %vm95, %v93, 0.0
    %v116 = vadd.f32 %v114, %v115
    %v117 = vsel %vm95, %v94, 0.0
    %v118 = vadd.f32 %v116, %v117
    %119 = vadd.xlane.f32.xlu0 %v118
    %v120 = vpop.xlane.xlu0 %119
    %v121 = vrot.slane %v120, 4
    %v122 = vadd.f32 %v120, %v121
    %v123 = vrot.slane %v122, 2
    %v124 = vadd.f32 %v122, %v123
    %v125 = vrot.slane %v124, 1
    %v126 = vadd.f32 %v124, %v125
    %s127 = vtos %v126
    %v128 = vstv %s127
    %v129 = vadd.f32 %v82, %v128
    %vm130 = vcmask 0
    %131 = vst.msk [vmem:[#allocation7] sm:$0x1] %vm130, %v129
    // Predicated region
    $region22: #{vae_composed_loss.2} parent=1 // pred_check
      _
    $region23: #{vae_composed_loss.2} parent=1 // pred_check_branch
      %133 = sbr.rel (0) target = $region25
    $region24: #{vae_composed_loss.2} parent=1 // pred_region
      %s135 = ssub.s32 16, 16
      %136 = vsyncadd [#allocation4], %s135
      %s138 = sshll.u32 [#allocation7], 4
      %s139 = int_to_ptr.vmem [resolvable:$true] %s138
      %141 = dma.vmem_to_hbm [thread:$0]  %s139, 16, %s2, [#allocation4]
    $region25: #{vae_composed_loss.2} parent=1 // pred_fallthru
      _
    // Predicated region
    $region26: #{vae_composed_loss.2} parent=1 // pred_check
      _
    $region27: #{vae_composed_loss.2} parent=1 // pred_check_branch
      %143 = sbr.rel (0) target = $region29
    $region28: #{vae_composed_loss.2} parent=1 // pred_region
      %144 = dma.done [#allocation4], 16
    $region29: #{vae_composed_loss.2} parent=1 // pred_fallthru
      _
    %145 = vsyncpa [#allocation3], 1
    %146 = vsyncpa [#allocation6], 1
    %147 = vsyncpa [#allocation4], 1

// kernel: vae_composed_loss.3
$region0: #{vae_composed_loss.3}
  #allocation0 [shape = 'u32[]', space=smem, size = 0x4, offset = 0x4, fixed_abs, tag = 'smem constant byte address 0x4 - core index']
  #allocation1 [shape = 'u32[144,128]{1,0:T(1,128)}', space=vmem, size = 0x12000, scoped, tag = 'internal scratch']
  %s0 = inlined_call_operand.vmem [shape: f32[2,8], index: 0, kind: input, shape index: {}]
  %s1 = inlined_call_operand.vmem [shape: f32[2,8], index: 1, kind: input, shape index: {}]
  %s2 = inlined_call_operand.hbm [shape: f32[1,1], index: 2, kind: output, shape index: {}]
  %s3 = sld [smem:[#allocation0]]
  $region22: #{vae_composed_loss.3} parent=0
    _
  %s5 = ssub.s32 1, %s3
  %s6 = scalar_select 0, %s5, %s3
  $region1: #{vae_composed_loss.3} parent=0
    #allocation2 [shape = 'u8[512]{0}', space=vmem, size = 0x400, scoped, tag = 'output window, operand 0, single buffered']
    #allocation3 [shape = 's32[1]{0}', space=sflag, size = 0x4, scoped, tag = 'scoped memory for vae_composed_loss.3']
    %7 = vsyncpa [#allocation3], 0
    // Predicated region
    $region2: #{vae_composed_loss.3} parent=1 // pred_check
      _
    $region3: #{vae_composed_loss.3} parent=1 // pred_check_branch
      %9 = sbr.rel (0) target = $region5
    $region4: #{vae_composed_loss.3} parent=1 // pred_region
      _
    $region5: #{vae_composed_loss.3} parent=1 // pred_fallthru
      _
    // Predicated region
    $region6: #{vae_composed_loss.3} parent=1 // pred_check
      _
    $region7: #{vae_composed_loss.3} parent=1 // pred_check_branch
      %11 = sbr.rel (0) target = $region9
    $region8: #{vae_composed_loss.3} parent=1 // pred_region
      _
    $region9: #{vae_composed_loss.3} parent=1 // pred_fallthru
      _
    %p12 = scmp.eq.s32.totalorder 0, 0
    // Predicated region
    $region10: #{vae_composed_loss.3} parent=1 // pred_check
      %p13 = pneg %p12
    $region11: #{vae_composed_loss.3} parent=1 // pred_check_branch
      %15 = sbr.rel (%p13) target = $region13
    $region12: #{vae_composed_loss.3} parent=1 // pred_region
      %vm16 = vcmask 0
      %17 = vst.msk [vmem:[#allocation2] sm:$0x1] %vm16, 0.0
    $region13: #{vae_composed_loss.3} parent=1 // pred_fallthru
      _
    %v18 = vld [vmem:[%s0] sm:$0x3]
    %v19 = vld [vmem:[%s1] sm:$0x3]
    %v20 = vld [vmem:[#allocation2] sm:$0x1]
    %v21 = vadd.f32 %v19, 1.0
    %v22 = vmul.f32 %v18, %v18
    %v23 = vsub.f32 %v21, %v22
    %v24 = vmul.f32 %v19, 1.442695
    %v25 = vpow.pop %v24
    %v26 = vsub.f32 %v23, %v25
    %vm27 = vcmask 58368
    %v28 = vsel %vm27, %v26, 0.0
    %29 = vadd.xlane.f32.xlu0 %v28
    %v30 = vpop.xlane.xlu0 %29
    %v31 = vrot.slane %v30, 4
    %v32 = vadd.f32 %v30, %v31
    %v33 = vrot.slane %v32, 2
    %v34 = vadd.f32 %v32, %v33
    %v35 = vrot.slane %v34, 1
    %v36 = vadd.f32 %v34, %v35
    %s37 = vtos %v36
    %v38 = vstv %s37
    %v39 = vadd.f32 %v20, %v38
    %vm40 = vcmask 0
    %41 = vst.msk [vmem:[#allocation2] sm:$0x1] %vm40, %v39
    // Predicated region
    $region14: #{vae_composed_loss.3} parent=1 // pred_check
      _
    $region15: #{vae_composed_loss.3} parent=1 // pred_check_branch
      %43 = sbr.rel (0) target = $region17
    $region16: #{vae_composed_loss.3} parent=1 // pred_region
      %s45 = ssub.s32 16, 16
      %46 = vsyncadd [#allocation3], %s45
      %s48 = sshll.u32 [#allocation2], 4
      %s49 = int_to_ptr.vmem [resolvable:$true] %s48
      %51 = dma.vmem_to_hbm [thread:$0]  %s49, 16, %s2, [#allocation3]
    $region17: #{vae_composed_loss.3} parent=1 // pred_fallthru
      _
    // Predicated region
    $region18: #{vae_composed_loss.3} parent=1 // pred_check
      _
    $region19: #{vae_composed_loss.3} parent=1 // pred_check_branch
      %53 = sbr.rel (0) target = $region21
    $region20: #{vae_composed_loss.3} parent=1 // pred_region
      %54 = dma.done [#allocation3], 16
    $region21: #{vae_composed_loss.3} parent=1 // pred_fallthru
      _
    %55 = vsyncpa [#allocation3], 1

</llo_original>
